<compile_context>
chip_gen: v5e
topology: v5e:2x2
jax: 0.10.0
libtpu: 0.0.40
codegen_flags: <defaults>
</compile_context>

<pallas_src>
import jax
import jax.numpy as jnp
from jax.experimental import pallas as pl
from jax.experimental.pallas import tpu as pltpu


def _mlp_kernel(x_ref, w1_ref, b1_ref, w2_ref, b2_ref, o_ref):
    """Fused MLP hot path for one batch tile: relu(x @ w1 + b1) @ w2 + b2."""
    # Linear 1 (bf16 in, f32 accumulate on MXU) + bias + ReLU in f32 on the VPU.
    h = jnp.dot(x_ref[...], w1_ref[...], preferred_element_type=jnp.float32)
    h = jnp.maximum(h + b1_ref[...], 0.0)
    # Linear 2 (cast activations back to bf16 for the MXU, accumulate f32).
    y = jnp.dot(h.astype(w2_ref.dtype), w2_ref[...],
                preferred_element_type=jnp.float32)
    o_ref[...] = (y + b2_ref[...]).astype(o_ref.dtype)


def _round_up(n, m):
    return ((n + m - 1) // m) * m


def mnist_classifier_forward(x_nchw, w1, b1, w2, b2, *, batch_tile=512):
    """x_nchw: (B, C, H, W) float32. Returns logits (B, d_out) float32.

    batch_tile: rows of x processed per grid step (clamped / rounded to a
    multiple of 8). For throughput runs use 512-2048; tiny batches collapse to
    a single tile.
    """
    B = x_nchw.shape[0]
    d_in, hidden = w1.shape
    d_out = w2.shape[1]

    # nn.Flatten(): (B, C, H, W) -> (B, C*H*W), row-major — glue in plain JAX.
    x2d = x_nchw.reshape(B, -1)
    assert x2d.shape[1] == d_in

    # Lane-aligned (multiple-of-128) padded sizes.
    d_in_p = _round_up(d_in, 128)     # 784 -> 896
    hid_p = _round_up(hidden, 128)    # 32  -> 128
    d_out_p = _round_up(d_out, 128)   # 10  -> 128

    # Batch tile: multiple of 8 sublanes, no larger than the (padded) batch.
    tb = _round_up(max(8, min(batch_tile, _round_up(B, 8))), 8)
    b_p = _round_up(B, tb)
    grid = (b_p // tb,)

    # Zero-pad operands. Matmul inputs in bf16, biases stay f32.
    x_p = jnp.zeros((b_p, d_in_p), jnp.bfloat16)
    x_p = x_p.at[:B, :d_in].set(x2d.astype(jnp.bfloat16))
    w1_p = jnp.zeros((d_in_p, hid_p), jnp.bfloat16)
    w1_p = w1_p.at[:d_in, :hidden].set(w1.astype(jnp.bfloat16))
    b1_p = jnp.zeros((1, hid_p), jnp.float32)
    b1_p = b1_p.at[0, :hidden].set(b1.astype(jnp.float32))
    w2_p = jnp.zeros((hid_p, d_out_p), jnp.bfloat16)
    w2_p = w2_p.at[:hidden, :d_out].set(w2.astype(jnp.bfloat16))
    b2_p = jnp.zeros((1, d_out_p), jnp.float32)
    b2_p = b2_p.at[0, :d_out].set(b2.astype(jnp.float32))

    out = pl.pallas_call(
        _mlp_kernel,
        out_shape=jax.ShapeDtypeStruct((b_p, d_out_p), jnp.float32),
        grid=grid,
        in_specs=[
            # x streams per batch tile.
            pl.BlockSpec((tb, d_in_p), lambda i: (i, 0)),
            # Weights / biases: same block for every grid step -> VMEM-resident.
            pl.BlockSpec((d_in_p, hid_p), lambda i: (0, 0)),
            pl.BlockSpec((1, hid_p), lambda i: (0, 0)),
            pl.BlockSpec((hid_p, d_out_p), lambda i: (0, 0)),
            pl.BlockSpec((1, d_out_p), lambda i: (0, 0)),
        ],
        out_specs=pl.BlockSpec((tb, d_out_p), lambda i: (i, 0)),
        compiler_params=pltpu.CompilerParams(
            dimension_semantics=("parallel",)),
    )(x_p, w1_p, b1_p, w2_p, b2_p)

    # Drop batch and lane padding.
    return out[:B, :d_out]


def init_params(key, in_shape, hidden_units, out_shape):
    """Deterministic init mirroring nn.Linear's U(-1/sqrt(fan_in), 1/sqrt(fan_in))."""
    k1, k2, k3, k4 = jax.random.split(key, 4)
    lim1 = 1.0 / jnp.sqrt(in_shape)
    lim2 = 1.0 / jnp.sqrt(hidden_units)
    w1 = jax.random.uniform(k1, (in_shape, hidden_units), jnp.float32, -lim1, lim1)
    b1 = jax.random.uniform(k2, (hidden_units,), jnp.float32, -lim1, lim1)
    w2 = jax.random.uniform(k3, (hidden_units, out_shape), jnp.float32, -lim2, lim2)
    b2 = jax.random.uniform(k4, (out_shape,), jnp.float32, -lim2, lim2)
    return w1, b1, w2, b2


if __name__ == "__main__":
    # MNIST-like but small: batch=32, 1x28x28 images -> in_shape=784, hidden=32, out=10.
    B, C, H, W = 32, 1, 28, 28
    in_shape, hidden_units, out_shape = C * H * W, 32, 10

    key = jax.random.PRNGKey(0)
    kx, kp = jax.random.split(key)
    x = jax.random.normal(kx, (B, C, H, W), jnp.float32)
    w1, b1, w2, b2 = init_params(kp, in_shape, hidden_units, out_shape)

    # Small batch tile so this test exercises the multi-step batch grid
    # (production would use batch_tile=512..2048 with large B).
    y = mnist_classifier_forward(x, w1, b1, w2, b2, batch_tile=8)
    jax.block_until_ready(y)

    # Sanity check against a pure-JAX f32 reference of the same forward pass.
    # Tolerance loosened for bf16 matmul inputs (f32 accumulation inside).
    ref = jnp.maximum(x.reshape(B, -1) @ w1 + b1, 0.0) @ w2 + b2
    assert y.shape == (B, out_shape)
    assert jnp.allclose(y, ref, atol=3e-2, rtol=3e-2), float(jnp.max(jnp.abs(y - ref)))

    print("KERNEL_OK")
</pallas_src>

<mosaic_0001>
module attributes {stable_mosaic.version = 11 : i64} {
  func.func @_mlp_kernel(%arg0: i32, %arg1: memref<8x896xbf16, #tpu.memory_space<vmem>>, %arg2: memref<896x128xbf16, #tpu.memory_space<vmem>>, %arg3: memref<1x128xf32, #tpu.memory_space<vmem>>, %arg4: memref<128x128xbf16, #tpu.memory_space<vmem>>, %arg5: memref<1x128xf32, #tpu.memory_space<vmem>>, %arg6: memref<8x128xf32, #tpu.memory_space<vmem>>) attributes {dimension_semantics = [#tpu.dimension_semantics<parallel>], iteration_bounds = array<i64: 4>, scalar_prefetch = 0 : i64, scratch_operands = 0 : i64, tpu.core_type = #tpu.core_type<tc>, window_params = [{transform_indices = @transform_0, window_bounds = array<i64: 8, 896>}, {pipeline_mode = #tpu.pipeline_mode<synchronous>, transform_indices = @transform_1, window_bounds = array<i64: 896, 128>}, {pipeline_mode = #tpu.pipeline_mode<synchronous>, transform_indices = @transform_2, window_bounds = array<i64: 1, 128>}, {pipeline_mode = #tpu.pipeline_mode<synchronous>, transform_indices = @transform_3, window_bounds = array<i64: 128, 128>}, {pipeline_mode = #tpu.pipeline_mode<synchronous>, transform_indices = @transform_4, window_bounds = array<i64: 1, 128>}, {transform_indices = @transform_5, window_bounds = array<i64: 8, 128>}]} {
    %c0 = arith.constant 0 : index
    %c0_0 = arith.constant 0 : index
    %0 = vector.load %arg1[%c0, %c0_0] : memref<8x896xbf16, #tpu.memory_space<vmem>>, vector<8x896xbf16>
    %c0_1 = arith.constant 0 : index
    %c0_2 = arith.constant 0 : index
    %1 = vector.load %arg2[%c0_1, %c0_2] : memref<896x128xbf16, #tpu.memory_space<vmem>>, vector<896x128xbf16>
    %cst = arith.constant dense<0.000000e+00> : vector<8x128xf32>
    %2 = tpu.matmul %0, %1, %cst {dimension_numbers = #tpu.dot_dimension_numbers<[1], [0], [0], [1], [0, 0, 1, 1], [], []>} : vector<8x896xbf16>, vector<896x128xbf16>, vector<8x128xf32> -> vector<8x128xf32>
    %c0_3 = arith.constant 0 : index
    %c0_4 = arith.constant 0 : index
    %3 = vector.load %arg3[%c0_3, %c0_4] : memref<1x128xf32, #tpu.memory_space<vmem>>, vector<1x128xf32>
    %4 = vector.broadcast %3 : vector<1x128xf32> to vector<8x128xf32>
    %5 = arith.addf %2, %4 : vector<8x128xf32>
    %cst_5 = arith.constant 0.000000e+00 : f32
    %6 = vector.broadcast %cst_5 : f32 to vector<8x128xf32>
    %7 = arith.maximumf %5, %6 : vector<8x128xf32>
    %8 = arith.truncf %7 : vector<8x128xf32> to vector<8x128xbf16>
    %c0_6 = arith.constant 0 : index
    %c0_7 = arith.constant 0 : index
    %9 = vector.load %arg4[%c0_6, %c0_7] : memref<128x128xbf16, #tpu.memory_space<vmem>>, vector<128x128xbf16>
    %cst_8 = arith.constant dense<0.000000e+00> : vector<8x128xf32>
    %10 = tpu.matmul %8, %9, %cst_8 {dimension_numbers = #tpu.dot_dimension_numbers<[1], [0], [0], [1], [0, 0, 1, 1], [], []>} : vector<8x128xbf16>, vector<128x128xbf16>, vector<8x128xf32> -> vector<8x128xf32>
    %c0_9 = arith.constant 0 : index
    %c0_10 = arith.constant 0 : index
    %11 = vector.load %arg5[%c0_9, %c0_10] : memref<1x128xf32, #tpu.memory_space<vmem>>, vector<1x128xf32>
    %12 = vector.broadcast %11 : vector<1x128xf32> to vector<8x128xf32>
    %13 = arith.addf %10, %12 : vector<8x128xf32>
    %c0_11 = arith.constant 0 : index
    %c0_12 = arith.constant 0 : index
    %14 = vector.load %arg6[%c0_11, %c0_12] : memref<8x128xf32, #tpu.memory_space<vmem>>, vector<8x128xf32>
    tpu.vector_store %arg6[%c0_11, %c0_12], %13 {strides = array<i32>} : memref<8x128xf32, #tpu.memory_space<vmem>>, vector<8x128xf32>,
    return
  }
  func.func @transform_0(%arg0: i32) -> (i32, i32) {
    %c0_i32 = arith.constant 0 : i32
    %c0_i32_0 = arith.constant 0 : i32
    return %arg0, %c0_i32 : i32, i32
  }
  func.func @transform_1(%arg0: i32) -> (i32, i32) {
    %c0_i32 = arith.constant 0 : i32
    %c0_i32_0 = arith.constant 0 : i32
    %c0_i32_1 = arith.constant 0 : i32
    return %c0_i32, %c0_i32_0 : i32, i32
  }
  func.func @transform_2(%arg0: i32) -> (i32, i32) {
    %c0_i32 = arith.constant 0 : i32
    %c0_i32_0 = arith.constant 0 : i32
    %c0_i32_1 = arith.constant 0 : i32
    return %c0_i32, %c0_i32_0 : i32, i32
  }
  func.func @transform_3(%arg0: i32) -> (i32, i32) {
    %c0_i32 = arith.constant 0 : i32
    %c0_i32_0 = arith.constant 0 : i32
    %c0_i32_1 = arith.constant 0 : i32
    return %c0_i32, %c0_i32_0 : i32, i32
  }
  func.func @transform_4(%arg0: i32) -> (i32, i32) {
    %c0_i32 = arith.constant 0 : i32
    %c0_i32_0 = arith.constant 0 : i32
    %c0_i32_1 = arith.constant 0 : i32
    return %c0_i32, %c0_i32_0 : i32, i32
  }
  func.func @transform_5(%arg0: i32) -> (i32, i32) {
    %c0_i32 = arith.constant 0 : i32
    %c0_i32_0 = arith.constant 0 : i32
    return %arg0, %c0_i32 : i32, i32
  }
}

</mosaic_0001>

<llo_original>
// kernel: tpu_custom_call.1
$region0: #{tpu_custom_call.1}
  #allocation0 [shape = 'u32[]', space=smem, size = 0x4, offset = 0x4, fixed_abs, tag = 'smem constant byte address 0x4 - core index']
  #allocation1 [shape = 'u32[72,128]{1,0:T(1,128)}', space=vmem, size = 0x9000, scoped, tag = 'internal scratch']
  %s0 = inlined_call_operand.hbm [shape: bf16[32,896], index: 0, kind: input, shape index: {}]
  %s1 = inlined_call_operand.hbm [shape: bf16[896,128], index: 1, kind: input, shape index: {}]
  %s2 = inlined_call_operand.vmem [shape: f32[1,128], index: 2, kind: input, shape index: {}]
  %s3 = inlined_call_operand.hbm [shape: bf16[128,128], index: 3, kind: input, shape index: {}]
  %s4 = inlined_call_operand.vmem [shape: f32[1,128], index: 4, kind: input, shape index: {}]
  %s5 = inlined_call_operand.hbm [shape: f32[32,128], index: 5, kind: output, shape index: {}]
  %s6 = sld [smem:[#allocation0]]
  $region65: #{tpu_custom_call.1} parent=0
    _
  %s8 = ssub.s32 1, %s6
  %s9 = scalar_select 0, %s8, %s6
  $region1: #{tpu_custom_call.1} parent=0
    #allocation2 [shape = 'u8[28672]{0}', space=vmem, size = 0x7000, scoped, tag = 'input window, operand 0']
    #allocation3 [shape = 's32[2]{0}', space=sflag, size = 0x8, scoped, tag = 'scoped memory for tpu_custom_call.1']
    #allocation4 [shape = 's32[2]{0}', space=sflag, size = 0x8, scoped, tag = 'scoped memory for tpu_custom_call.1']
    #allocation5 [shape = 'u8[229376]{0}', space=vmem, size = 0x38000, scoped, tag = 'input window, operand 1, single buffered']
    #allocation6 [shape = 's32[1]{0}', space=sflag, size = 0x4, scoped, tag = 'scoped memory for tpu_custom_call.1']
    #allocation7 [shape = 'u8[32768]{0}', space=vmem, size = 0x8000, scoped, tag = 'input window, operand 3, single buffered']
    #allocation8 [shape = 'u8[8192]{0}', space=vmem, size = 0x2000, scoped, tag = 'output window, operand 0']
    %10 = vsyncpa [#allocation3], 0
    %s11 = scalar_lea.sflag [#allocation3], 1
    %12 = vsyncpa %s11, 0
    %13 = vsyncpa [#allocation6], 0
    %14 = vsyncpa [#allocation4], 0
    %s15 = scalar_lea.sflag [#allocation4], 1
    %16 = vsyncpa %s15, 0
    loop: start=0, step=1, limit=6
    $region2: #{tpu_custom_call.1} parent=1 // loop_pre_header
      _
    $region3: #{tpu_custom_call.1} parent=1 // loop_header
      %s18 = sphi 0, %s22
      %p19 = scmp.ge.s32.totalorder %s18, 6
      %s28 = sphi 0, %s30
      %s31 = sphi 0, %s28
      %s32 = sphi 0, %s31
      %s48 = sphi 0, %s32
      %s52 = sphi 0, %s52
      %s54 = sphi 0, %s52
      %s55 = sphi 0, %s54
      %s69 = sphi 0, %s55
      %s73 = sphi 0, %s73
      %s75 = sphi 0, %s73
      %s76 = sphi 0, %s75
      %s90 = sphi 0, %s76
      %s94 = sphi 0, %s94
      %s96 = sphi 0, %s94
      %s97 = sphi 0, %s96
      %s111 = sphi 0, %s97
      %s115 = sphi 0, %s115
      %s117 = sphi 0, %s115
      %s118 = sphi 0, %s117
      %s132 = sphi 0, %s118
      %s138 = sphi 0, %s140
      %s141 = sphi 0, %s138
      %s142 = sphi 0, %s141
      %s158 = sphi 0, %s142
    $region4: #{tpu_custom_call.1} parent=1 // loop_header_branch
      %21 = sbr.rel (%p19) target = $region8
    $region5: #{tpu_custom_call.1} parent=1 // loop_body
      %s23 = ssub.s32 %s18, 1
      %s24 = ssub.s32 %s18, 2
      %s25 = sadd.s32 %s18, 1
      %s26 = ssub.s32 %s18, %s25
      %p27 = scmp.eq.s32.totalorder %s26, 0
      %s29 = sadd.s32 %s28, 1
      %s30 = scalar_select %p27, %s28, %s29
      %p33 = pneg %p27
      %p34 = scmp.eq.s32.totalorder %s18, 3
      %p35 = por %p33, %p34
      %p36 = scmp.ne.s32.totalorder %s28, %s31
      %p37 = scmp.eq.s32.totalorder %s18, 0
      %p38 = por %p36, %p37
      %p39 = scmp.ne.s32.totalorder %s28, %s31
      %p40 = scmp.eq.s32.totalorder %s23, 3
      %p41 = por %p39, %p40
      %p42 = scmp.ne.s32.totalorder %s31, %s32
      %p43 = scmp.eq.s32.totalorder %s23, 0
      %p44 = por %p42, %p43
      %p45 = scmp.ne.s32.totalorder %s31, %s32
      %p46 = scmp.eq.s32.totalorder %s24, 3
      %p47 = por %p45, %p46
      %p49 = scmp.ne.s32.totalorder %s32, %s48
      %p50 = scmp.eq.s32.totalorder %s24, 0
      %p51 = por %p49, %p50
      %s53 = sadd.s32 %s52, 1
      %p56 = scmp.eq.s32.totalorder %s18, 3
      %p57 = scmp.ne.s32.totalorder %s52, %s54
      %p58 = scmp.eq.s32.totalorder %s18, 0
      %p59 = por %p57, %p58
      %p60 = scmp.ne.s32.totalorder %s52, %s54
      %p61 = scmp.eq.s32.totalorder %s23, 3
      %p62 = por %p60, %p61
      %p63 = scmp.ne.s32.totalorder %s54, %s55
      %p64 = scmp.eq.s32.totalorder %s23, 0
      %p65 = por %p63, %p64
      %p66 = scmp.ne.s32.totalorder %s54, %s55
      %p67 = scmp.eq.s32.totalorder %s24, 3
      %p68 = por %p66, %p67
      %p70 = scmp.ne.s32.totalorder %s55, %s69
      %p71 = scmp.eq.s32.totalorder %s24, 0
      %p72 = por %p70, %p71
      %s74 = sadd.s32 %s73, 1
      %p77 = scmp.eq.s32.totalorder %s18, 3
      %p78 = scmp.ne.s32.totalorder %s73, %s75
      %p79 = scmp.eq.s32.totalorder %s18, 0
      %p80 = por %p78, %p79
      %p81 = scmp.ne.s32.totalorder %s73, %s75
      %p82 = scmp.eq.s32.totalorder %s23, 3
      %p83 = por %p81, %p82
      %p84 = scmp.ne.s32.totalorder %s75, %s76
      %p85 = scmp.eq.s32.totalorder %s23, 0
      %p86 = por %p84, %p85
      %p87 = scmp.ne.s32.totalorder %s75, %s76
      %p88 = scmp.eq.s32.totalorder %s24, 3
      %p89 = por %p87, %p88
      %p91 = scmp.ne.s32.totalorder %s76, %s90
      %p92 = scmp.eq.s32.totalorder %s24, 0
      %p93 = por %p91, %p92
      %s95 = sadd.s32 %s94, 1
      %p98 = scmp.eq.s32.totalorder %s18, 3
      %p99 = scmp.ne.s32.totalorder %s94, %s96
      %p100 = scmp.eq.s32.totalorder %s18, 0
      %p101 = por %p99, %p100
      %p102 = scmp.ne.s32.totalorder %s94, %s96
      %p103 = scmp.eq.s32.totalorder %s23, 3
      %p104 = por %p102, %p103
      %p105 = scmp.ne.s32.totalorder %s96, %s97
      %p106 = scmp.eq.s32.totalorder %s23, 0
      %p107 = por %p105, %p106
      %p108 = scmp.ne.s32.totalorder %s96, %s97
      %p109 = scmp.eq.s32.totalorder %s24, 3
      %p110 = por %p108, %p109
      %p112 = scmp.ne.s32.totalorder %s97, %s111
      %p113 = scmp.eq.s32.totalorder %s24, 0
      %p114 = por %p112, %p113
      %s116 = sadd.s32 %s115, 1
      %p119 = scmp.eq.s32.totalorder %s18, 3
      %p120 = scmp.ne.s32.totalorder %s115, %s117
      %p121 = scmp.eq.s32.totalorder %s18, 0
      %p122 = por %p120, %p121
      %p123 = scmp.ne.s32.totalorder %s115, %s117
      %p124 = scmp.eq.s32.totalorder %s23, 3
      %p125 = por %p123, %p124
      %p126 = scmp.ne.s32.totalorder %s117, %s118
      %p127 = scmp.eq.s32.totalorder %s23, 0
      %p128 = por %p126, %p127
      %p129 = scmp.ne.s32.totalorder %s117, %s118
      %p130 = scmp.eq.s32.totalorder %s24, 3
      %p131 = por %p129, %p130
      %p133 = scmp.ne.s32.totalorder %s118, %s132
      %p134 = scmp.eq.s32.totalorder %s24, 0
      %p135 = por %p133, %p134
      %s136 = ssub.s32 %s18, %s25
      %p137 = scmp.eq.s32.totalorder %s136, 0
      %s139 = sadd.s32 %s138, 1
      %s140 = scalar_select %p137, %s138, %s139
      %p143 = pneg %p137
      %p144 = scmp.eq.s32.totalorder %s18, 3
      %p145 = por %p143, %p144
      %p146 = scmp.ne.s32.totalorder %s138, %s141
      %p147 = scmp.eq.s32.totalorder %s18, 0
      %p148 = por %p146, %p147
      %p149 = scmp.ne.s32.totalorder %s138, %s141
      %p150 = scmp.eq.s32.totalorder %s23, 3
      %p151 = por %p149, %p150
      %p152 = scmp.ne.s32.totalorder %s141, %s142
      %p153 = scmp.eq.s32.totalorder %s23, 0
      %p154 = por %p152, %p153
      %p155 = scmp.ne.s32.totalorder %s141, %s142
      %p156 = scmp.eq.s32.totalorder %s24, 3
      %p157 = por %p155, %p156
      %p159 = scmp.ne.s32.totalorder %s142, %s158
      %p160 = scmp.eq.s32.totalorder %s24, 0
      %p161 = por %p159, %p160
      %p162 = scmp.le.s32.totalorder 1, %s18
      %p163 = scmp.lt.s32.totalorder %s18, 5
      %p164 = pnand %p162, %p163
      %p165 = pneg %p164
      // Predicated region
      $region9: #{tpu_custom_call.1} parent=5 // pred_check
        _
      $region10: #{tpu_custom_call.1} parent=5 // pred_check_branch
        %167 = sbr.rel (%p164) target = $region12
      $region11: #{tpu_custom_call.1} parent=5 // pred_region
        %s168 = ssub.s32 %s18, 1
        // Predicated region
        $region13: #{tpu_custom_call.1} parent=11 // pred_check
          %p169 = pneg %p65
        $region14: #{tpu_custom_call.1} parent=11 // pred_check_branch
          %171 = sbr.rel (%p169) target = $region16
        $region15: #{tpu_custom_call.1} parent=11 // pred_region
          %173 = vsyncadd [#allocation6], 0
          %s174 = sshll.u32 %s1, 4
          %s175 = int_to_ptr.hbm [resolvable:$true] %s174
          %s176 = sshll.u32 [#allocation5], 4
          %s177 = int_to_ptr.vmem [resolvable:$true] %s176
          %182 = dma.hbm_to_vmem [thread:$0]  %s175, 7168, %s177, [#allocation6], 64, 64, 4
        $region16: #{tpu_custom_call.1} parent=11 // pred_fallthru
          _
        // Predicated region
        $region17: #{tpu_custom_call.1} parent=11 // pred_check
          %p183 = pneg %p86
        $region18: #{tpu_custom_call.1} parent=11 // pred_check_branch
          %185 = sbr.rel (%p183) target = $region20
        $region19: #{tpu_custom_call.1} parent=11 // pred_region
          _
        $region20: #{tpu_custom_call.1} parent=11 // pred_fallthru
          _
        // Predicated region
        $region21: #{tpu_custom_call.1} parent=11 // pred_check
          %p186 = pneg %p107
        $region22: #{tpu_custom_call.1} parent=11 // pred_check_branch
          %188 = sbr.rel (%p186) target = $region24
        $region23: #{tpu_custom_call.1} parent=11 // pred_region
          %190 = vsyncadd [#allocation6], 0
          %s191 = sshll.u32 %s3, 4
          %s192 = int_to_ptr.hbm [resolvable:$true] %s191
          %s193 = sshll.u32 [#allocation7], 4
          %s194 = int_to_ptr.vmem [resolvable:$true] %s193
          %199 = dma.hbm_to_vmem [thread:$0]  %s192, 1024, %s194, [#allocation6], 64, 64, 4
        $region24: #{tpu_custom_call.1} parent=11 // pred_fallthru
          _
        // Predicated region
        $region25: #{tpu_custom_call.1} parent=11 // pred_check
          %p200 = pneg %p128
        $region26: #{tpu_custom_call.1} parent=11 // pred_check_branch
          %202 = sbr.rel (%p200) target = $region28
        $region27: #{tpu_custom_call.1} parent=11 // pred_region
          _
        $region28: #{tpu_custom_call.1} parent=11 // pred_fallthru
          _
      $region12: #{tpu_custom_call.1} parent=5 // pred_fallthru
        _
      %p203 = scmp.lt.s32.totalorder %s18, 4
      // Predicated region
      $region29: #{tpu_custom_call.1} parent=5 // pred_check
        %p204 = pneg %p203
      $region30: #{tpu_custom_call.1} parent=5 // pred_check_branch
        %206 = sbr.rel (%p204) target = $region32
      $region31: #{tpu_custom_call.1} parent=5 // pred_region
        // Predicated region
        $region33: #{tpu_custom_call.1} parent=31 // pred_check
          %p207 = pneg %p38
        $region34: #{tpu_custom_call.1} parent=31 // pred_check_branch
          %209 = sbr.rel (%p207) target = $region36
        $region35: #{tpu_custom_call.1} parent=31 // pred_region
          %s210 = sand.u32 %s28, 1
          %s211 = scalar_lea.sflag [#allocation3], %s210
          %s212 = sand.u32 %s28, 1
          %s213 = smul.addr %s212, 28
          %s214 = scalar_lea.vmem [#allocation2], %s213
          %216 = vsyncadd %s211, 0
          %s217 = smul.addr %s18, 7
          %s218 = smul.addr %s217, 4
          %s219 = scalar_lea.hbm %s0, %s218
          %s221 = sshll.u32 %s219, 4
          %s222 = int_to_ptr.hbm [resolvable:$true] %s221
          %s223 = sshll.u32 %s214, 4
          %s224 = int_to_ptr.vmem [resolvable:$true] %s223
          %226 = dma.hbm_to_vmem [thread:$0]  %s222, 448, %s224, %s211
        $region36: #{tpu_custom_call.1} parent=31 // pred_fallthru
          _
      $region32: #{tpu_custom_call.1} parent=5 // pred_fallthru
        _
      %p227 = scmp.le.s32.totalorder 1, %s18
      %p228 = scmp.lt.s32.totalorder %s18, 5
      %p229 = pnand %p227, %p228
      %p230 = pneg %p229
      // Predicated region
      $region37: #{tpu_custom_call.1} parent=5 // pred_check
        _
      $region38: #{tpu_custom_call.1} parent=5 // pred_check_branch
        %232 = sbr.rel (%p229) target = $region40
      $region39: #{tpu_custom_call.1} parent=5 // pred_region
        %s233 = ssub.s32 %s18, 1
        %s234 = sand.u32 %s31, 1
        %s235 = scalar_lea.sflag [#allocation3], %s234
        %s236 = sand.u32 %s31, 1
        %s237 = smul.addr %s236, 28
        %s238 = scalar_lea.vmem [#allocation2], %s237
        // Predicated region
        $region41: #{tpu_custom_call.1} parent=39 // pred_check
          %p239 = pneg %p44
        $region42: #{tpu_custom_call.1} parent=39 // pred_check_branch
          %241 = sbr.rel (%p239) target = $region44
        $region43: #{tpu_custom_call.1} parent=39 // pred_region
          %243 = dma.done %s235, 448
        $region44: #{tpu_custom_call.1} parent=39 // pred_fallthru
          _
        // Predicated region
        $region45: #{tpu_custom_call.1} parent=39 // pred_check
          %p244 = pneg %p65
        $region46: #{tpu_custom_call.1} parent=39 // pred_check_branch
          %246 = sbr.rel (%p244) target = $region48
        $region47: #{tpu_custom_call.1} parent=39 // pred_region
          %248 = dma.done [#allocation6], 7168
        $region48: #{tpu_custom_call.1} parent=39 // pred_fallthru
          _
        // Predicated region
        $region49: #{tpu_custom_call.1} parent=39 // pred_check
          %p249 = pneg %p107
        $region50: #{tpu_custom_call.1} parent=39 // pred_check_branch
          %251 = sbr.rel (%p249) target = $region52
        $region51: #{tpu_custom_call.1} parent=39 // pred_region
          %253 = dma.done [#allocation6], 1024
        $region52: #{tpu_custom_call.1} parent=39 // pred_fallthru
          _
        %s254 = sand.u32 %s31, 1
        %s255 = scalar_lea.sflag [#allocation3], %s254
        %s256 = sand.u32 %s31, 1
        %s257 = smul.addr %s256, 28
        %s258 = scalar_lea.vmem [#allocation2], %s257
        %p259 = pneg %p44
        %p260 = pneg %p41
        %p261 = pneg %p65
        %p262 = pneg %p62
        %p263 = pneg %p86
        %p264 = pneg %p83
        %p265 = pneg %p107
        %p266 = pneg %p104
        %p267 = pneg %p128
        %p268 = pneg %p125
        %p269 = pneg %p154
        %p270 = pneg %p151
        %s271 = sand.u32 %s141, 1
        %s272 = scalar_lea.sflag [#allocation4], %s271
        %s273 = sand.u32 %s141, 1
        %s274 = smul.addr %s273, 8
        %s275 = scalar_lea.vmem [#allocation8], %s274
        %v276 = vld [vmem:[%s238] sm:$0xff]
        %v277 = vld [vmem:[%s238 + $0x8] sm:$0xff]
        %v278 = vld [vmem:[%s238 + $0x10] sm:$0xff]
        %v279 = vld [vmem:[%s238 + $0x18] sm:$0xf]
        %v280 = vld [vmem:[#allocation5] sm:$0xf]
        %v281 = vld [vmem:[#allocation5 + $0x4] sm:$0xf]
        %v282 = vld [vmem:[#allocation5 + $0x8] sm:$0xf]
        %v283 = vld [vmem:[#allocation5 + $0xc] sm:$0xf]
        %v284 = vld [vmem:[#allocation5 + $0x10] sm:$0xf]
        %v285 = vld [vmem:[#allocation5 + $0x14] sm:$0xf]
        %v286 = vld [vmem:[#allocation5 + $0x18] sm:$0xf]
        %v287 = vld [vmem:[#allocation5 + $0x1c] sm:$0xf]
        %v288 = vld [vmem:[#allocation5 + $0x20] sm:$0xf]
        %v289 = vld [vmem:[#allocation5 + $0x24] sm:$0xf]
        %v290 = vld [vmem:[#allocation5 + $0x28] sm:$0xf]
        %v291 = vld [vmem:[#allocation5 + $0x2c] sm:$0xf]
        %v292 = vld [vmem:[#allocation5 + $0x30] sm:$0xf]
        %v293 = vld [vmem:[#allocation5 + $0x34] sm:$0xf]
        %v294 = vld [vmem:[#allocation5 + $0x38] sm:$0xf]
        %v295 = vld [vmem:[#allocation5 + $0x3c] sm:$0xf]
        %v296 = vld [vmem:[#allocation5 + $0x40] sm:$0xf]
        %v297 = vld [vmem:[#allocation5 + $0x44] sm:$0xf]
        %v298 = vld [vmem:[#allocation5 + $0x48] sm:$0xf]
        %v299 = vld [vmem:[#allocation5 + $0x4c] sm:$0xf]
        %v300 = vld [vmem:[#allocation5 + $0x50] sm:$0xf]
        %v301 = vld [vmem:[#allocation5 + $0x54] sm:$0xf]
        %v302 = vld [vmem:[#allocation5 + $0x58] sm:$0xf]
        %v303 = vld [vmem:[#allocation5 + $0x5c] sm:$0xf]
        %v304 = vld [vmem:[#allocation5 + $0x60] sm:$0xf]
        %v305 = vld [vmem:[#allocation5 + $0x64] sm:$0xf]
        %v306 = vld [vmem:[#allocation5 + $0x68] sm:$0xf]
        %v307 = vld [vmem:[#allocation5 + $0x6c] sm:$0xf]
        %v308 = vld [vmem:[#allocation5 + $0x70] sm:$0xf]
        %v309 = vld [vmem:[#allocation5 + $0x74] sm:$0xf]
        %v310 = vld [vmem:[#allocation5 + $0x78] sm:$0xf]
        %v311 = vld [vmem:[#allocation5 + $0x7c] sm:$0xf]
        %v312 = vld [vmem:[#allocation5 + $0x80] sm:$0xf]
        %v313 = vld [vmem:[#allocation5 + $0x84] sm:$0xf]
        %v314 = vld [vmem:[#allocation5 + $0x88] sm:$0xf]
        %v315 = vld [vmem:[#allocation5 + $0x8c] sm:$0xf]
        %v316 = vld [vmem:[#allocation5 + $0x90] sm:$0xf]
        %v317 = vld [vmem:[#allocation5 + $0x94] sm:$0xf]
        %v318 = vld [vmem:[#allocation5 + $0x98] sm:$0xf]
        %v319 = vld [vmem:[#allocation5 + $0x9c] sm:$0xf]
        %v320 = vld [vmem:[#allocation5 + $0xa0] sm:$0xf]
        %v321 = vld [vmem:[#allocation5 + $0xa4] sm:$0xf]
        %v322 = vld [vmem:[#allocation5 + $0xa8] sm:$0xf]
        %v323 = vld [vmem:[#allocation5 + $0xac] sm:$0xf]
        %v324 = vld [vmem:[#allocation5 + $0xb0] sm:$0xf]
        %v325 = vld [vmem:[#allocation5 + $0xb4] sm:$0xf]
        %v326 = vld [vmem:[#allocation5 + $0xb8] sm:$0xf]
        %v327 = vld [vmem:[#allocation5 + $0xbc] sm:$0xf]
        %v328 = vld [vmem:[#allocation5 + $0xc0] sm:$0xf]
        %v329 = vld [vmem:[#allocation5 + $0xc4] sm:$0xf]
        %v330 = vld [vmem:[#allocation5 + $0xc8] sm:$0xf]
        %v331 = vld [vmem:[#allocation5 + $0xcc] sm:$0xf]
        %v332 = vld [vmem:[#allocation5 + $0xd0] sm:$0xf]
        %v333 = vld [vmem:[#allocation5 + $0xd4] sm:$0xf]
        %v334 = vld [vmem:[#allocation5 + $0xd8] sm:$0xf]
        %v335 = vld [vmem:[#allocation5 + $0xdc] sm:$0xf]
        %v336 = vld [vmem:[#allocation5 + $0xe0] sm:$0xf]
        %v337 = vld [vmem:[#allocation5 + $0xe4] sm:$0xf]
        %v338 = vld [vmem:[#allocation5 + $0xe8] sm:$0xf]
        %v339 = vld [vmem:[#allocation5 + $0xec] sm:$0xf]
        %v340 = vld [vmem:[#allocation5 + $0xf0] sm:$0xf]
        %v341 = vld [vmem:[#allocation5 + $0xf4] sm:$0xf]
        %v342 = vld [vmem:[#allocation5 + $0xf8] sm:$0xf]
        %v343 = vld [vmem:[#allocation5 + $0xfc] sm:$0xf]
        %v344 = vld [vmem:[#allocation5 + $0x100] sm:$0xf]
        %v345 = vld [vmem:[#allocation5 + $0x104] sm:$0xf]
        %v346 = vld [vmem:[#allocation5 + $0x108] sm:$0xf]
        %v347 = vld [vmem:[#allocation5 + $0x10c] sm:$0xf]
        %v348 = vld [vmem:[#allocation5 + $0x110] sm:$0xf]
        %v349 = vld [vmem:[#allocation5 + $0x114] sm:$0xf]
        %v350 = vld [vmem:[#allocation5 + $0x118] sm:$0xf]
        %v351 = vld [vmem:[#allocation5 + $0x11c] sm:$0xf]
        %v352 = vld [vmem:[#allocation5 + $0x120] sm:$0xf]
        %v353 = vld [vmem:[#allocation5 + $0x124] sm:$0xf]
        %v354 = vld [vmem:[#allocation5 + $0x128] sm:$0xf]
        %v355 = vld [vmem:[#allocation5 + $0x12c] sm:$0xf]
        %v356 = vld [vmem:[#allocation5 + $0x130] sm:$0xf]
        %v357 = vld [vmem:[#allocation5 + $0x134] sm:$0xf]
        %v358 = vld [vmem:[#allocation5 + $0x138] sm:$0xf]
        %v359 = vld [vmem:[#allocation5 + $0x13c] sm:$0xf]
        %v360 = vld [vmem:[#allocation5 + $0x140] sm:$0xf]
        %v361 = vld [vmem:[#allocation5 + $0x144] sm:$0xf]
        %v362 = vld [vmem:[#allocation5 + $0x148] sm:$0xf]
        %v363 = vld [vmem:[#allocation5 + $0x14c] sm:$0xf]
        %v364 = vld [vmem:[#allocation5 + $0x150] sm:$0xf]
        %v365 = vld [vmem:[#allocation5 + $0x154] sm:$0xf]
        %v366 = vld [vmem:[#allocation5 + $0x158] sm:$0xf]
        %v367 = vld [vmem:[#allocation5 + $0x15c] sm:$0xf]
        %v368 = vld [vmem:[#allocation5 + $0x160] sm:$0xf]
        %v369 = vld [vmem:[#allocation5 + $0x164] sm:$0xf]
        %v370 = vld [vmem:[#allocation5 + $0x168] sm:$0xf]
        %v371 = vld [vmem:[#allocation5 + $0x16c] sm:$0xf]
        %v372 = vld [vmem:[#allocation5 + $0x170] sm:$0xf]
        %v373 = vld [vmem:[#allocation5 + $0x174] sm:$0xf]
        %v374 = vld [vmem:[#allocation5 + $0x178] sm:$0xf]
        %v375 = vld [vmem:[#allocation5 + $0x17c] sm:$0xf]
        %v376 = vld [vmem:[#allocation5 + $0x180] sm:$0xf]
        %v377 = vld [vmem:[#allocation5 + $0x184] sm:$0xf]
        %v378 = vld [vmem:[#allocation5 + $0x188] sm:$0xf]
        %v379 = vld [vmem:[#allocation5 + $0x18c] sm:$0xf]
        %v380 = vld [vmem:[#allocation5 + $0x190] sm:$0xf]
        %v381 = vld [vmem:[#allocation5 + $0x194] sm:$0xf]
        %v382 = vld [vmem:[#allocation5 + $0x198] sm:$0xf]
        %v383 = vld [vmem:[#allocation5 + $0x19c] sm:$0xf]
        %v384 = vld [vmem:[#allocation5 + $0x1a0] sm:$0xf]
        %v385 = vld [vmem:[#allocation5 + $0x1a4] sm:$0xf]
        %v386 = vld [vmem:[#allocation5 + $0x1a8] sm:$0xf]
        %v387 = vld [vmem:[#allocation5 + $0x1ac] sm:$0xf]
        %v388 = vld [vmem:[#allocation5 + $0x1b0] sm:$0xf]
        %v389 = vld [vmem:[#allocation5 + $0x1b4] sm:$0xf]
        %v390 = vld [vmem:[#allocation5 + $0x1b8] sm:$0xf]
        %v391 = vld [vmem:[#allocation5 + $0x1bc] sm:$0xf]
        %v392 = vld [vmem:[%s2] sm:$0x1]
        %v394 = vperm.slane %v392, 0
        %v400 = vunpack.c.l.b16 %v276
        %v401 = vunpack.c.h.b16 %v276
        %v402 = vunpack.c.l.b16 %v277
        %v403 = vunpack.c.h.b16 %v277
        %v404 = vunpack.c.l.b16 %v278
        %v405 = vunpack.c.h.b16 %v278
        %v406 = vunpack.c.l.b16 %v279
        %v407 = vpack.c.b16 %v400, %v400
        %v408 = vpack.c.b16 %v401, %v401
        %v409 = vpack.c.b16 %v402, %v402
        %v410 = vpack.c.b16 %v403, %v403
        %v411 = vpack.c.b16 %v404, %v404
        %v412 = vpack.c.b16 %v405, %v405
        %v413 = vpack.c.b16 %v406, %v406
        %v533 = vunpack.c.l.b16 %v280
        %v534 = vunpack.c.l.b16 %v281
        %v535 = vunpack.c.l.b16 %v282
        %v536 = vunpack.c.l.b16 %v283
        %v537 = vunpack.c.l.b16 %v284
        %v538 = vunpack.c.l.b16 %v285
        %v539 = vunpack.c.l.b16 %v286
        %v540 = vunpack.c.l.b16 %v287
        %v541 = vunpack.c.l.b16 %v288
        %v542 = vunpack.c.l.b16 %v289
        %v543 = vunpack.c.l.b16 %v290
        %v544 = vunpack.c.l.b16 %v291
        %v545 = vunpack.c.l.b16 %v292
        %v546 = vunpack.c.l.b16 %v293
        %v547 = vunpack.c.l.b16 %v294
        %v548 = vunpack.c.l.b16 %v295
        %v549 = vunpack.c.l.b16 %v296
        %v550 = vunpack.c.l.b16 %v297
        %v551 = vunpack.c.l.b16 %v298
        %v552 = vunpack.c.l.b16 %v299
        %v553 = vunpack.c.l.b16 %v300
        %v554 = vunpack.c.l.b16 %v301
        %v555 = vunpack.c.l.b16 %v302
        %v556 = vunpack.c.l.b16 %v303
        %v557 = vunpack.c.l.b16 %v304
        %v558 = vunpack.c.l.b16 %v305
        %v559 = vunpack.c.l.b16 %v306
        %v560 = vunpack.c.l.b16 %v307
        %v561 = vunpack.c.l.b16 %v308
        %v562 = vunpack.c.l.b16 %v309
        %v563 = vunpack.c.l.b16 %v310
        %v564 = vunpack.c.l.b16 %v311
        %v565 = vunpack.c.l.b16 %v312
        %v566 = vunpack.c.l.b16 %v313
        %v567 = vunpack.c.l.b16 %v314
        %v568 = vunpack.c.l.b16 %v315
        %v569 = vunpack.c.l.b16 %v316
        %v570 = vunpack.c.l.b16 %v317
        %v571 = vunpack.c.l.b16 %v318
        %v572 = vunpack.c.l.b16 %v319
        %v573 = vunpack.c.l.b16 %v320
        %v574 = vunpack.c.l.b16 %v321
        %v575 = vunpack.c.l.b16 %v322
        %v576 = vunpack.c.l.b16 %v323
        %v577 = vunpack.c.l.b16 %v324
        %v578 = vunpack.c.l.b16 %v325
        %v579 = vunpack.c.l.b16 %v326
        %v580 = vunpack.c.l.b16 %v327
        %v581 = vunpack.c.l.b16 %v328
        %v582 = vunpack.c.l.b16 %v329
        %v583 = vunpack.c.l.b16 %v330
        %v584 = vunpack.c.l.b16 %v331
        %v585 = vunpack.c.l.b16 %v332
        %v586 = vunpack.c.l.b16 %v333
        %v587 = vunpack.c.l.b16 %v334
        %v588 = vunpack.c.l.b16 %v335
        %v589 = vunpack.c.l.b16 %v336
        %v590 = vunpack.c.l.b16 %v337
        %v591 = vunpack.c.l.b16 %v338
        %v592 = vunpack.c.l.b16 %v339
        %v593 = vunpack.c.l.b16 %v340
        %v594 = vunpack.c.l.b16 %v341
        %v595 = vunpack.c.l.b16 %v342
        %v596 = vunpack.c.l.b16 %v343
        %v597 = vunpack.c.l.b16 %v344
        %v598 = vunpack.c.l.b16 %v345
        %v599 = vunpack.c.l.b16 %v346
        %v600 = vunpack.c.l.b16 %v347
        %v601 = vunpack.c.l.b16 %v348
        %v602 = vunpack.c.l.b16 %v349
        %v603 = vunpack.c.l.b16 %v350
        %v604 = vunpack.c.l.b16 %v351
        %v605 = vunpack.c.l.b16 %v352
        %v606 = vunpack.c.l.b16 %v353
        %v607 = vunpack.c.l.b16 %v354
        %v608 = vunpack.c.l.b16 %v355
        %v609 = vunpack.c.l.b16 %v356
        %v610 = vunpack.c.l.b16 %v357
        %v611 = vunpack.c.l.b16 %v358
        %v612 = vunpack.c.l.b16 %v359
        %v613 = vunpack.c.l.b16 %v360
        %v614 = vunpack.c.l.b16 %v361
        %v615 = vunpack.c.l.b16 %v362
        %v616 = vunpack.c.l.b16 %v363
        %v617 = vunpack.c.l.b16 %v364
        %v618 = vunpack.c.l.b16 %v365
        %v619 = vunpack.c.l.b16 %v366
        %v620 = vunpack.c.l.b16 %v367
        %v621 = vunpack.c.l.b16 %v368
        %v622 = vunpack.c.l.b16 %v369
        %v623 = vunpack.c.l.b16 %v370
        %v624 = vunpack.c.l.b16 %v371
        %v625 = vunpack.c.l.b16 %v372
        %v626 = vunpack.c.l.b16 %v373
        %v627 = vunpack.c.l.b16 %v374
        %v628 = vunpack.c.l.b16 %v375
        %v629 = vunpack.c.l.b16 %v376
        %v630 = vunpack.c.l.b16 %v377
        %v631 = vunpack.c.l.b16 %v378
        %v632 = vunpack.c.l.b16 %v379
        %v633 = vunpack.c.l.b16 %v380
        %v634 = vunpack.c.l.b16 %v381
        %v635 = vunpack.c.l.b16 %v382
        %v636 = vunpack.c.l.b16 %v383
        %v637 = vunpack.c.l.b16 %v384
        %v638 = vunpack.c.l.b16 %v385
        %v639 = vunpack.c.l.b16 %v386
        %v640 = vunpack.c.l.b16 %v387
        %v641 = vunpack.c.l.b16 %v388
        %v642 = vunpack.c.l.b16 %v389
        %v643 = vunpack.c.l.b16 %v390
        %v644 = vunpack.c.l.b16 %v391
        %v645 = vpack.c.b16 %v534, %v533
        %v646 = vpack.c.b16 %v536, %v535
        %v647 = vpack.c.b16 %v538, %v537
        %v648 = vpack.c.b16 %v540, %v539
        %v649 = vpack.c.b16 %v542, %v541
        %v650 = vpack.c.b16 %v544, %v543
        %v651 = vpack.c.b16 %v546, %v545
        %v652 = vpack.c.b16 %v548, %v547
        %v653 = vpack.c.b16 %v550, %v549
        %v654 = vpack.c.b16 %v552, %v551
        %v655 = vpack.c.b16 %v554, %v553
        %v656 = vpack.c.b16 %v556, %v555
        %v657 = vpack.c.b16 %v558, %v557
        %v658 = vpack.c.b16 %v560, %v559
        %v659 = vpack.c.b16 %v562, %v561
        %v660 = vpack.c.b16 %v564, %v563
        %v661 = vpack.c.b16 %v566, %v565
        %v662 = vpack.c.b16 %v568, %v567
        %v663 = vpack.c.b16 %v570, %v569
        %v664 = vpack.c.b16 %v572, %v571
        %v665 = vpack.c.b16 %v574, %v573
        %v666 = vpack.c.b16 %v576, %v575
        %v667 = vpack.c.b16 %v578, %v577
        %v668 = vpack.c.b16 %v580, %v579
        %v669 = vpack.c.b16 %v582, %v581
        %v670 = vpack.c.b16 %v584, %v583
        %v671 = vpack.c.b16 %v586, %v585
        %v672 = vpack.c.b16 %v588, %v587
        %v673 = vpack.c.b16 %v590, %v589
        %v674 = vpack.c.b16 %v592, %v591
        %v675 = vpack.c.b16 %v594, %v593
        %v676 = vpack.c.b16 %v596, %v595
        %v677 = vpack.c.b16 %v598, %v597
        %v678 = vpack.c.b16 %v600, %v599
        %v679 = vpack.c.b16 %v602, %v601
        %v680 = vpack.c.b16 %v604, %v603
        %v681 = vpack.c.b16 %v606, %v605
        %v682 = vpack.c.b16 %v608, %v607
        %v683 = vpack.c.b16 %v610, %v609
        %v684 = vpack.c.b16 %v612, %v611
        %v685 = vpack.c.b16 %v614, %v613
        %v686 = vpack.c.b16 %v616, %v615
        %v687 = vpack.c.b16 %v618, %v617
        %v688 = vpack.c.b16 %v620, %v619
        %v689 = vpack.c.b16 %v622, %v621
        %v690 = vpack.c.b16 %v624, %v623
        %v691 = vpack.c.b16 %v626, %v625
        %v692 = vpack.c.b16 %v628, %v627
        %v693 = vpack.c.b16 %v630, %v629
        %v694 = vpack.c.b16 %v632, %v631
        %v695 = vpack.c.b16 %v634, %v633
        %v696 = vpack.c.b16 %v636, %v635
        %v697 = vpack.c.b16 %v638, %v637
        %v698 = vpack.c.b16 %v640, %v639
        %v699 = vpack.c.b16 %v642, %v641
        %v700 = vpack.c.b16 %v644, %v643
        %757 = vmatpush.bf16.msra.mxu0 %v652
        %758 = vmatpush.bf16.msra.mxu0 %v651
        %759 = vmatpush.bf16.msra.mxu0 %v650
        %760 = vmatpush.bf16.msra.mxu0 %v649
        %761 = vmatpush.bf16.msra.mxu0 %v648
        %762 = vmatpush.bf16.msra.mxu0 %v647
        %763 = vmatpush.bf16.msra.mxu0 %v646
        %764 = vmatpush.bf16.msra.mxu0 %v645
        %765 = vmatmul.bf16.gmra.mxu0 %v407
        %v766 = vpop.f32.mrf.mxu0
        %v767 = vadd.f32 %v394, %v766
        %v768 = vpop.f32.mrf.mxu0
        %769 = vdwg.mxu0
        %770 = vmatpush.bf16.msra.mxu0 %v660
        %771 = vmatpush.bf16.msra.mxu0 %v659
        %772 = vmatpush.bf16.msra.mxu0 %v658
        %773 = vmatpush.bf16.msra.mxu0 %v657
        %774 = vmatpush.bf16.msra.mxu0 %v656
        %775 = vmatpush.bf16.msra.mxu0 %v655
        %776 = vmatpush.bf16.msra.mxu0 %v654
        %777 = vmatpush.bf16.msra.mxu0 %v653
        %778 = vmatmul.bf16.gmra.mxu0 %v408
        %v779 = vpop.f32.mrf.mxu0
        %v780 = vadd.f32 %v767, %v779
        %v781 = vpop.f32.mrf.mxu0
        %782 = vdwg.mxu0
        %783 = vmatpush.bf16.msra.mxu0 %v668
        %784 = vmatpush.bf16.msra.mxu0 %v667
        %785 = vmatpush.bf16.msra.mxu0 %v666
        %786 = vmatpush.bf16.msra.mxu0 %v665
        %787 = vmatpush.bf16.msra.mxu0 %v664
        %788 = vmatpush.bf16.msra.mxu0 %v663
        %789 = vmatpush.bf16.msra.mxu0 %v662
        %790 = vmatpush.bf16.msra.mxu0 %v661
        %791 = vmatmul.bf16.gmra.mxu0 %v409
        %v792 = vpop.f32.mrf.mxu0
        %v793 = vadd.f32 %v780, %v792
        %v794 = vpop.f32.mrf.mxu0
        %795 = vdwg.mxu0
        %796 = vmatpush.bf16.msra.mxu0 %v676
        %797 = vmatpush.bf16.msra.mxu0 %v675
        %798 = vmatpush.bf16.msra.mxu0 %v674
        %799 = vmatpush.bf16.msra.mxu0 %v673
        %800 = vmatpush.bf16.msra.mxu0 %v672
        %801 = vmatpush.bf16.msra.mxu0 %v671
        %802 = vmatpush.bf16.msra.mxu0 %v670
        %803 = vmatpush.bf16.msra.mxu0 %v669
        %804 = vmatmul.bf16.gmra.mxu0 %v410
        %v805 = vpop.f32.mrf.mxu0
        %v806 = vadd.f32 %v793, %v805
        %v807 = vpop.f32.mrf.mxu0
        %808 = vdwg.mxu0
        %809 = vmatpush.bf16.msra.mxu0 %v684
        %810 = vmatpush.bf16.msra.mxu0 %v683
        %811 = vmatpush.bf16.msra.mxu0 %v682
        %812 = vmatpush.bf16.msra.mxu0 %v681
        %813 = vmatpush.bf16.msra.mxu0 %v680
        %814 = vmatpush.bf16.msra.mxu0 %v679
        %815 = vmatpush.bf16.msra.mxu0 %v678
        %816 = vmatpush.bf16.msra.mxu0 %v677
        %817 = vmatmul.bf16.gmra.mxu0 %v411
        %v818 = vpop.f32.mrf.mxu0
        %v819 = vadd.f32 %v806, %v818
        %v820 = vpop.f32.mrf.mxu0
        %821 = vdwg.mxu0
        %822 = vmatpush.bf16.msra.mxu0 %v692
        %823 = vmatpush.bf16.msra.mxu0 %v691
        %824 = vmatpush.bf16.msra.mxu0 %v690
        %825 = vmatpush.bf16.msra.mxu0 %v689
        %826 = vmatpush.bf16.msra.mxu0 %v688
        %827 = vmatpush.bf16.msra.mxu0 %v687
        %828 = vmatpush.bf16.msra.mxu0 %v686
        %829 = vmatpush.bf16.msra.mxu0 %v685
        %830 = vmatmul.bf16.gmra.mxu0 %v412
        %v831 = vpop.f32.mrf.mxu0
        %v832 = vadd.f32 %v819, %v831
        %v833 = vpop.f32.mrf.mxu0
        %834 = vdwg.mxu0
        %835 = vmatpush.bf16.msra.mxu0 %v700
        %836 = vmatpush.bf16.msra.mxu0 %v699
        %837 = vmatpush.bf16.msra.mxu0 %v698
        %838 = vmatpush.bf16.msra.mxu0 %v697
        %839 = vmatpush.bf16.msra.mxu0 %v696
        %840 = vmatpush.bf16.msra.mxu0 %v695
        %841 = vmatpush.bf16.msra.mxu0 %v694
        %842 = vmatpush.bf16.msra.mxu0 %v693
        %843 = vmatmul.bf16.gmra.mxu0 %v413
        %v844 = vpop.f32.mrf.mxu0
        %v845 = vadd.f32 %v832, %v844
        %v846 = vpop.f32.mrf.mxu0
        %847 = vdwg.mxu0
        %v848 = vmax.f32 %v845, 0.0
        %v849 = vpack.c.bf16 %v848, %v848
        %v850 = vld [vmem:[#allocation7] sm:$0xf]
        %v851 = vld [vmem:[#allocation7 + $0x4] sm:$0xf]
        %v852 = vld [vmem:[#allocation7 + $0x8] sm:$0xf]
        %v853 = vld [vmem:[#allocation7 + $0xc] sm:$0xf]
        %v854 = vld [vmem:[#allocation7 + $0x10] sm:$0xf]
        %v855 = vld [vmem:[#allocation7 + $0x14] sm:$0xf]
        %v856 = vld [vmem:[#allocation7 + $0x18] sm:$0xf]
        %v857 = vld [vmem:[#allocation7 + $0x1c] sm:$0xf]
        %v858 = vld [vmem:[#allocation7 + $0x20] sm:$0xf]
        %v859 = vld [vmem:[#allocation7 + $0x24] sm:$0xf]
        %v860 = vld [vmem:[#allocation7 + $0x28] sm:$0xf]
        %v861 = vld [vmem:[#allocation7 + $0x2c] sm:$0xf]
        %v862 = vld [vmem:[#allocation7 + $0x30] sm:$0xf]
        %v863 = vld [vmem:[#allocation7 + $0x34] sm:$0xf]
        %v864 = vld [vmem:[#allocation7 + $0x38] sm:$0xf]
        %v865 = vld [vmem:[#allocation7 + $0x3c] sm:$0xf]
        %v866 = vld [vmem:[%s4] sm:$0x1]
        %v868 = vperm.slane %v866, 0
        %v886 = vunpack.c.l.b16 %v850
        %v887 = vunpack.c.l.b16 %v851
        %v888 = vunpack.c.l.b16 %v852
        %v889 = vunpack.c.l.b16 %v853
        %v890 = vunpack.c.l.b16 %v854
        %v891 = vunpack.c.l.b16 %v855
        %v892 = vunpack.c.l.b16 %v856
        %v893 = vunpack.c.l.b16 %v857
        %v894 = vunpack.c.l.b16 %v858
        %v895 = vunpack.c.l.b16 %v859
        %v896 = vunpack.c.l.b16 %v860
        %v897 = vunpack.c.l.b16 %v861
        %v898 = vunpack.c.l.b16 %v862
        %v899 = vunpack.c.l.b16 %v863
        %v900 = vunpack.c.l.b16 %v864
        %v901 = vunpack.c.l.b16 %v865
        %v902 = vpack.c.b16 %v887, %v886
        %v903 = vpack.c.b16 %v889, %v888
        %v904 = vpack.c.b16 %v891, %v890
        %v905 = vpack.c.b16 %v893, %v892
        %v906 = vpack.c.b16 %v895, %v894
        %v907 = vpack.c.b16 %v897, %v896
        %v908 = vpack.c.b16 %v899, %v898
        %v909 = vpack.c.b16 %v901, %v900
        %918 = vmatpush.bf16.msra.mxu0 %v909
        %919 = vmatpush.bf16.msra.mxu0 %v908
        %920 = vmatpush.bf16.msra.mxu0 %v907
        %921 = vmatpush.bf16.msra.mxu0 %v906
        %922 = vmatpush.bf16.msra.mxu0 %v905
        %923 = vmatpush.bf16.msra.mxu0 %v904
        %924 = vmatpush.bf16.msra.mxu0 %v903
        %925 = vmatpush.bf16.msra.mxu0 %v902
        %926 = vmatmul.bf16.gmra.mxu0 %v849
        %v927 = vpop.f32.mrf.mxu0
        %v928 = vadd.f32 %v868, %v927
        %v929 = vpop.f32.mrf.mxu0
        %930 = vdwg.mxu0
        %931 = vst [vmem:[%s275] sm:$0xff] %v928
        %s932 = sand.u32 %s141, 1
        %s933 = scalar_lea.sflag [#allocation4], %s932
        %s934 = sand.u32 %s141, 1
        %s935 = smul.addr %s934, 8
        %s936 = scalar_lea.vmem [#allocation8], %s935
        // Predicated region
        $region53: #{tpu_custom_call.1} parent=39 // pred_check
          %p937 = pneg %p151
        $region54: #{tpu_custom_call.1} parent=39 // pred_check_branch
          %939 = sbr.rel (%p937) target = $region56
        $region55: #{tpu_custom_call.1} parent=39 // pred_region
          %941 = vsyncadd %s933, 0
          %s942 = smul.addr %s23, 8
          %s943 = scalar_lea.hbm %s5, %s942
          %s945 = sshll.u32 %s936, 4
          %s946 = int_to_ptr.vmem [resolvable:$true] %s945
          %s947 = sshll.u32 %s943, 4
          %s948 = int_to_ptr.hbm [resolvable:$true] %s947
          %950 = dma.vmem_to_hbm [thread:$0]  %s946, 128, %s948, %s933
        $region56: #{tpu_custom_call.1} parent=39 // pred_fallthru
          _
      $region40: #{tpu_custom_call.1} parent=5 // pred_fallthru
        _
      %p951 = scmp.le.s32.totalorder 2, %s18
      // Predicated region
      $region57: #{tpu_custom_call.1} parent=5 // pred_check
        %p952 = pneg %p951
      $region58: #{tpu_custom_call.1} parent=5 // pred_check_branch
        %954 = sbr.rel (%p952) target = $region60
      $region59: #{tpu_custom_call.1} parent=5 // pred_region
        %s955 = ssub.s32 %s18, 2
        // Predicated region
        $region61: #{tpu_custom_call.1} parent=59 // pred_check
          %p956 = pneg %p157
        $region62: #{tpu_custom_call.1} parent=59 // pred_check_branch
          %958 = sbr.rel (%p956) target = $region64
        $region63: #{tpu_custom_call.1} parent=59 // pred_region
          %s959 = sand.u32 %s142, 1
          %s960 = scalar_lea.sflag [#allocation4], %s959
          %s961 = sand.u32 %s142, 1
          %s962 = smul.addr %s961, 8
          %s963 = scalar_lea.vmem [#allocation8], %s962
          %965 = dma.done %s960, 128
        $region64: #{tpu_custom_call.1} parent=59 // pred_fallthru
          _
      $region60: #{tpu_custom_call.1} parent=5 // pred_fallthru
        _
    $region6: #{tpu_custom_call.1} parent=1 // loop_footer
      %s22 = sadd.s32 1, %s18
    $region7: #{tpu_custom_call.1} parent=1 // loop_footer_branch
      %17 = sbr.rel target = $region3
    $region8: #{tpu_custom_call.1} parent=1 // loop_exit
      _
    %966 = vsyncpa [#allocation3], 1
    %s967 = scalar_lea.sflag [#allocation3], 1
    %968 = vsyncpa %s967, 1
    %969 = vsyncpa [#allocation6], 1
    %970 = vsyncpa [#allocation4], 1
    %s971 = scalar_lea.sflag [#allocation4], 1
    %972 = vsyncpa %s971, 1

</llo_original>
